<compile_context>
chip_gen: v6e
topology: v6e:2x2x1
jax: 0.10.0
libtpu: 0.0.40
codegen_flags: <defaults>
</compile_context>

<pallas_src>
import functools

import jax
import jax.numpy as jnp
import numpy as np
from jax import lax
from jax.experimental import pallas as pl
from jax.experimental.pallas import tpu as pltpu


def _urc_den_kernel(feat_row_ref, feat_colt_ref, den_ref, *, inv_t, n_real, tk):
    """Accumulate den_i = sum_{j != i, j < n_real} exp((cos_ij - 1) * inv_t) per row.

    feat_row_ref : (CB, N_pad, D)  L2-normalized features (resident per class block)
    feat_colt_ref: (CB, D, TK)     same features, transposed column tile (MXU-native RHS)
    den_ref      : (CB, 1, N_pad)  f32 output, revisited across column tiles (accumulator)
    """
    ki = pl.program_id(1)

    @pl.when(ki == 0)
    def _init():
        den_ref[...] = jnp.zeros_like(den_ref)

    # Gram tile on the MXU (LHS contracts last dim, RHS contracts first dim -> no
    # in-kernel transpose), f32 accumulation.
    cos = jnp.einsum("cnd,cdm->cnm", feat_row_ref[...], feat_colt_ref[...],
                     preferred_element_type=jnp.float32)

    # Constant shift by the row max (diag cosine == 1 after normalization).  Numerically
    # stable for any T; the shift is exactly undone in the wrapper, so the forward value
    # matches the reference for both is_stable settings.
    e = jnp.exp((cos - 1.0) * inv_t)

    # In-tile masking of the self pair (and zero-padded columns) instead of subtracting
    # the self term afterwards -> no catastrophic cancellation when off-diagonal
    # contributions are tiny.
    rows = lax.broadcasted_iota(jnp.int32, cos.shape, 1)
    cols = lax.broadcasted_iota(jnp.int32, cos.shape, 2) + ki * tk
    keep = cols != rows
    if n_real < cos.shape[1]:                       # padded columns exist (static branch)
        keep = jnp.logical_and(keep, cols < n_real)

    partial = jnp.sum(jnp.where(keep, e, 0.0), axis=-1)          # (CB, N_pad)
    den_ref[...] = den_ref[...] + partial[:, None, :]


def _round_up(x, m):
    return -(-x // m) * m


def _vmem_caps():
    """(vmem_limit cap, per-step working-set budget) derived from the physical VMEM."""
    try:
        phys = int(pltpu.get_tpu_info().vmem_capacity_bytes)
    except Exception:
        phys = 64 * 2 ** 20                       # conservative (v7x) fallback
    cap = max(32 * 2 ** 20, phys - 16 * 2 ** 20)  # leave headroom for Mosaic internals
    budget = min(cap // 2, 32 * 2 ** 20)          # ~24 MiB on v7x, 32 MiB on v5e/v6e
    return cap, budget


def _pick_tiles(n, budget, col_tile=None):
    """Return (n_pad, tk): pad N to a lane multiple and pick a column tile in VMEM budget."""
    if col_tile:
        tk = int(col_tile)
        return _round_up(n, tk), tk
    if n % 128 != 0 and n <= 256:
        return n, n                               # tiny N: one full-width tile, no padding
    n_pad = _round_up(n, 128)
    tk = 128
    for t in (1024, 512, 256):
        if n_pad % t == 0 and 4 * n_pad * t * 4 <= budget:
            tk = t
            break
    return n_pad, tk


def _pick_classes_per_step(c, n_pad, d, tk, use_bf16, budget):
    """Classes per grid step within the VMEM budget (padding-aware estimate)."""
    mmb = 2 if use_bf16 else 4
    d_lane = _round_up(d, 128)                    # feature last dim pads to 128 lanes
    per_class = (2 * n_pad * d_lane * mmb         # resident row block (x2 buffers)
                 + 2 * d * tk * mmb               # streamed transposed column tile (x2)
                 + 2 * 8 * n_pad * 4              # (1, n_pad) output block, sublane-padded
                 + 4 * n_pad * tk * 4)            # f32 gram/exp/mask temporaries
    cb = max(1, min(c, budget // max(per_class, 1)))
    if c >= 2:
        cb = min(cb, -(-c // 2))                  # >=2 class blocks -> v7x megacore busy
    return int(cb), int(per_class)


def urc_loss(outputs, targets, features, *,
             temperature=0.1, base_temperature=1.0, feature_dim=32,
             lambda_ctr=1.0, class_weights=None, is_stable=False,
             ctr_enable=True, classes_per_step=None, col_tile=None, use_bf16=True):
    """JAX/Pallas equivalent of URCLoss.forward (instance_weights=None path)."""
    if not ctr_enable:
        return jnp.float32(0.0)
    # is_stable only changes the reference's floating-point path (row-max subtraction);
    # the forward value is shift-invariant and the kernel always runs the stable form.
    del is_stable

    B, V = features.shape[0], features.shape[1]
    features = features.reshape(B, V, -1).astype(jnp.float32)
    targets = targets.reshape(B, V, -1).astype(jnp.float32)
    C = int(outputs.shape[-1])
    D = int(feature_dim)
    N = V * B
    inv_t = float(1.0 / temperature)

    # Class-major relayout, row order v*B + b (matches torch.cat(torch.unbind(x, 1), 0)).
    feat = jnp.transpose(features.reshape(B, V, C, D), (2, 1, 0, 3)).reshape(C, N, D)
    lab = jnp.transpose(targets, (2, 1, 0)).reshape(C, N)

    # Fused into the relayout round-trip: L2 normalization (F.normalize, eps=1e-12).
    ss = jnp.sum(feat * feat, axis=-1, keepdims=True)
    featn = feat * lax.rsqrt(jnp.maximum(ss, 1e-24))

    # O(C*N*D) per-row terms that never need the gram (labels are binary AU targets).
    # TODO(synk): assumes binary {0,1} labels (as in the AU supervision this loss targets);
    #             arbitrary label values would need the full pairwise equality mask.
    self_logit = inv_t * jnp.sum(featn * featn, axis=-1)                 # (C, N) ~= 1/T
    n_pos = jnp.sum(lab, axis=1, keepdims=True)                          # (C, 1)
    msum = lab * n_pos + (1.0 - lab) * (N - n_pos) - 1.0                 # matches, minus self
    u_pos = jnp.einsum("cn,cnd->cd", lab, featn)
    u_neg = jnp.einsum("cn,cnd->cd", 1.0 - lab, featn)
    s_pos = jnp.einsum("cnd,cd->cn", featn, u_pos)
    s_neg = jnp.einsum("cnd,cd->cn", featn, u_neg)
    pos = inv_t * (lab * s_pos + (1.0 - lab) * s_neg) - self_logit       # excl. self

    # Kernel configuration (device/padding aware).
    cap, budget = _vmem_caps()
    n_pad, tk = _pick_tiles(N, budget, col_tile)
    cb_auto, per_class_bytes = _pick_classes_per_step(C, n_pad, D, tk, use_bf16, budget)
    cb = int(max(1, min(C, classes_per_step))) if classes_per_step else cb_auto
    g = -(-C // cb)
    c_pad = g * cb
    mm_dtype = jnp.bfloat16 if use_bf16 else jnp.float32

    feat_row = featn.astype(mm_dtype)
    if c_pad != C or n_pad != N:
        feat_row = jnp.pad(feat_row, ((0, c_pad - C), (0, n_pad - N), (0, 0)))
    feat_colt = jnp.transpose(feat_row, (0, 2, 1))            # (c_pad, D, n_pad)

    vmem_limit = int(min(cap, max(32 * 2 ** 20, cb * per_class_bytes + 2 * 2 ** 20)))

    kernel = functools.partial(_urc_den_kernel, inv_t=inv_t, n_real=N, tk=tk)
    den3 = pl.pallas_call(
        kernel,
        out_shape=jax.ShapeDtypeStruct((c_pad, 1, n_pad), jnp.float32),
        grid_spec=pltpu.PrefetchScalarGridSpec(
            num_scalar_prefetch=0,
            grid=(g, n_pad // tk),
            in_specs=[
                pl.BlockSpec((cb, n_pad, D), lambda gi, ki: (gi, 0, 0)),   # rows, resident
                pl.BlockSpec((cb, D, tk), lambda gi, ki: (gi, 0, ki)),     # column tile
            ],
            out_specs=pl.BlockSpec((cb, 1, n_pad), lambda gi, ki: (gi, 0, 0)),
        ),
        compiler_params=pltpu.CompilerParams(
            dimension_semantics=("parallel", "arbitrary"),
            vmem_limit_bytes=vmem_limit),
    )(feat_row, feat_colt)

    # Tiny O(C*N) final math stays in plain JAX.
    den = den3[:C, 0, :N]
    log_den = jnp.log(den) + inv_t                 # undo the constant in-kernel 1/T shift
    mlpp = (pos - msum * log_den) / (msum + 1e-6)  # mean_log_prob_pos numerator / count
    per_class_loss = -(temperature / base_temperature) * jnp.mean(mlpp, axis=1)
    # TODO(synk): instance_weights (pos/neg reweighting of mask columns) not implemented;
    #             the module's default construction uses instance_weights=None.
    if class_weights is not None:
        per_class_loss = per_class_loss * (1.0 - jnp.asarray(class_weights, jnp.float32))
    return lambda_ctr * (jnp.sum(per_class_loss) / C)


def _urc_loss_ref(outputs, targets, features, *,
                  temperature=0.1, base_temperature=1.0, feature_dim=32,
                  lambda_ctr=1.0, is_stable=False):
    """Pure-numpy reference mirroring the PyTorch forward (defaults: no weights)."""
    features = np.asarray(features, np.float32)
    targets = np.asarray(targets, np.float32)
    B, V = features.shape[0], features.shape[1]
    features = features.reshape(B, V, -1)
    targets = targets.reshape(B, V, -1)
    C = outputs.shape[-1]
    D = feature_dim
    losses = []
    for i in range(C):
        f = features[:, :, i * D:(i + 1) * D]                       # (B, V, D)
        f = np.concatenate([f[:, v, :] for v in range(V)], axis=0)  # (N, D)
        f = f / np.maximum(np.linalg.norm(f, axis=1, keepdims=True), 1e-12)
        lab = targets[:, :, i]
        lab = np.concatenate([lab[:, v] for v in range(V)], axis=0).reshape(-1, 1)
        mask = (lab == lab.T).astype(np.float32)
        logits = f @ f.T / temperature
        if is_stable:
            logits = logits - logits.max(axis=1, keepdims=True)
        logits_mask = 1.0 - np.eye(lab.shape[0], dtype=np.float32)
        mask = mask * logits_mask
        exp_logits = np.exp(logits) * logits_mask
        log_prob = logits - np.log(exp_logits.sum(axis=1, keepdims=True))
        mean_log_prob_pos = (mask * log_prob).sum(1) / (mask.sum(1) + 1e-6)
        au = -(temperature / base_temperature) * mean_log_prob_pos
        losses.append(au.mean())
    return lambda_ctr * (np.sum(np.stack(losses)) / C)


if __name__ == "__main__":
    key = jax.random.PRNGKey(0)
    B, V, C, D = 4, 2, 4, 32   # batch, n_views, num_class, feature_dim

    k1, k2, k3 = jax.random.split(key, 3)
    features = jax.random.normal(k1, (B, V, C * D), dtype=jnp.float32)
    targets = jax.random.bernoulli(k2, 0.5, (B, V, C)).astype(jnp.float32)
    outputs = jax.random.normal(k3, (B, V, C), dtype=jnp.float32)

    loss = urc_loss(outputs, targets, features, temperature=0.1,
                    base_temperature=1.0, feature_dim=D, lambda_ctr=1.0)
    loss = jax.block_until_ready(loss)
    ref = _urc_loss_ref(np.asarray(outputs), np.asarray(targets), np.asarray(features),
                        temperature=0.1, base_temperature=1.0, feature_dim=D)
    # bf16 MXU gram -> slightly looser tolerance than a pure-f32 kernel.
    np.testing.assert_allclose(np.asarray(loss), ref, rtol=2e-2, atol=2e-2)

    # is_stable reference path (forward value is shift-invariant; kernel is always stable).
    loss_s = jax.block_until_ready(
        urc_loss(outputs, targets, features, temperature=0.1, base_temperature=1.0,
                 feature_dim=D, lambda_ctr=1.0, is_stable=True))
    ref_s = _urc_loss_ref(np.asarray(outputs), np.asarray(targets), np.asarray(features),
                          temperature=0.1, base_temperature=1.0, feature_dim=D,
                          is_stable=True)
    np.testing.assert_allclose(np.asarray(loss_s), ref_s, rtol=2e-2, atol=2e-2)

    # Class-padding / multi-class-block path: C=3 with 2 classes per step (pads to 4).
    C2 = 3
    k4, k5, k6 = jax.random.split(jax.random.PRNGKey(1), 3)
    features2 = jax.random.normal(k4, (B, V, C2 * D), dtype=jnp.float32)
    targets2 = jax.random.bernoulli(k5, 0.5, (B, V, C2)).astype(jnp.float32)
    outputs2 = jax.random.normal(k6, (B, V, C2), dtype=jnp.float32)
    loss2 = jax.block_until_ready(
        urc_loss(outputs2, targets2, features2, temperature=0.1, base_temperature=1.0,
                 feature_dim=D, lambda_ctr=1.0, classes_per_step=2))
    ref2 = _urc_loss_ref(np.asarray(outputs2), np.asarray(targets2),
                         np.asarray(features2), temperature=0.1, base_temperature=1.0,
                         feature_dim=D)
    np.testing.assert_allclose(np.asarray(loss2), ref2, rtol=2e-2, atol=2e-2)

    # N-padding / column-masking path: force a 128-wide column tile on N=8.
    loss3 = jax.block_until_ready(
        urc_loss(outputs, targets, features, temperature=0.1, base_temperature=1.0,
                 feature_dim=D, lambda_ctr=1.0, col_tile=128))
    np.testing.assert_allclose(np.asarray(loss3), ref, rtol=2e-2, atol=2e-2)

    print("KERNEL_OK")
</pallas_src>

<mosaic_0001>
module attributes {stable_mosaic.version = 11 : i64} {
  func.func @_urc_den_kernel(%arg0: i32, %arg1: i32, %arg2: memref<2x8x32xbf16, #tpu.memory_space<vmem>>, %arg3: memref<2x32x8xbf16, #tpu.memory_space<vmem>>, %arg4: memref<2x1x8xf32, #tpu.memory_space<vmem>>) attributes {dimension_semantics = [#tpu.dimension_semantics<parallel>, #tpu.dimension_semantics<arbitrary>], iteration_bounds = array<i64: 2, 1>, scalar_prefetch = 0 : i64, scratch_operands = 0 : i64, tpu.core_type = #tpu.core_type<tc>, window_params = [{transform_indices = @transform_0, window_bounds = array<i64: 2, 8, 32>}, {transform_indices = @transform_1, window_bounds = array<i64: 2, 32, 8>}, {transform_indices = @transform_2, window_bounds = array<i64: 2, 1, 8>}]} {
    %c0_i32 = arith.constant 0 : i32
    %0 = arith.cmpi eq, %arg1, %c0_i32 : i32
    %1 = arith.extui %0 : i1 to i32
    %c0_i32_0 = arith.constant 0 : i32
    %2 = arith.cmpi ne, %1, %c0_i32_0 : i32
    scf.if %2 {
      %cst_16 = arith.constant 0.000000e+00 : f32
      %24 = vector.broadcast %cst_16 : f32 to vector<2x1x8xf32>
      %c0_17 = arith.constant 0 : index
      %c0_18 = arith.constant 0 : index
      %c0_19 = arith.constant 0 : index
      %25 = vector.load %arg4[%c0_17, %c0_18, %c0_19] : memref<2x1x8xf32, #tpu.memory_space<vmem>>, vector<2x1x8xf32>
      tpu.vector_store %arg4[%c0_17, %c0_18, %c0_19], %24 {strides = array<i32>} : memref<2x1x8xf32, #tpu.memory_space<vmem>>, vector<2x1x8xf32>,
    } else {
    }
    %c0 = arith.constant 0 : index
    %c0_1 = arith.constant 0 : index
    %c0_2 = arith.constant 0 : index
    %3 = vector.load %arg2[%c0, %c0_1, %c0_2] : memref<2x8x32xbf16, #tpu.memory_space<vmem>>, vector<2x8x32xbf16>
    %c0_3 = arith.constant 0 : index
    %c0_4 = arith.constant 0 : index
    %c0_5 = arith.constant 0 : index
    %4 = vector.load %arg3[%c0_3, %c0_4, %c0_5] : memref<2x32x8xbf16, #tpu.memory_space<vmem>>, vector<2x32x8xbf16>
    "tpu.trace_start"() <{level = 10 : i32, message = "cnd,cdm->cnm"}> : () -> ()
    %cst = arith.constant dense<0.000000e+00> : vector<2x8x8xf32>
    %5 = tpu.matmul %3, %4, %cst {dimension_numbers = #tpu.dot_dimension_numbers<[2], [1], [1], [2], [0, 0, 0, 1, 1, 2], [0], [0]>} : vector<2x8x32xbf16>, vector<2x32x8xbf16>, vector<2x8x8xf32> -> vector<2x8x8xf32>
    "tpu.trace_stop"() : () -> ()
    %cst_6 = arith.constant 1.000000e+00 : f32
    %6 = vector.broadcast %cst_6 : f32 to vector<2x8x8xf32>
    %7 = arith.subf %5, %6 : vector<2x8x8xf32>
    %cst_7 = arith.constant 1.000000e+01 : f32
    %8 = vector.broadcast %cst_7 : f32 to vector<2x8x8xf32>
    %9 = arith.mulf %7, %8 : vector<2x8x8xf32>
    %10 = math.exp %9 : vector<2x8x8xf32>
    %11 = tpu.iota {dimensions = array<i32: 1>} : vector<2x8x8xi32>
    %12 = tpu.iota {dimensions = array<i32: 2>} : vector<2x8x8xi32>
    %c8_i32 = arith.constant 8 : i32
    %13 = arith.muli %arg1, %c8_i32 : i32
    %14 = vector.broadcast %13 : i32 to vector<2x8x8xi32>
    %15 = arith.addi %12, %14 : vector<2x8x8xi32>
    %16 = arith.cmpi ne, %15, %11 : vector<2x8x8xi32>
    %cst_8 = arith.constant 0.000000e+00 : f32
    %17 = vector.broadcast %cst_8 : f32 to vector<2x8x8xf32>
    %18 = arith.select %16, %10, %17 : vector<2x8x8xi1>, vector<2x8x8xf32>
    %cst_9 = arith.constant dense<0.000000e+00> : vector<2x8xf32>
    %19 = vector.multi_reduction <add>, %18, %cst_9 [2] : vector<2x8x8xf32> to vector<2x8xf32>
    %c0_10 = arith.constant 0 : index
    %c0_11 = arith.constant 0 : index
    %c0_12 = arith.constant 0 : index
    %20 = vector.load %arg4[%c0_10, %c0_11, %c0_12] : memref<2x1x8xf32, #tpu.memory_space<vmem>>, vector<2x1x8xf32>
    %21 = vector.shape_cast %19 : vector<2x8xf32> to vector<2x1x8xf32>
    %22 = arith.addf %20, %21 : vector<2x1x8xf32>
    %c0_13 = arith.constant 0 : index
    %c0_14 = arith.constant 0 : index
    %c0_15 = arith.constant 0 : index
    %23 = vector.load %arg4[%c0_13, %c0_14, %c0_15] : memref<2x1x8xf32, #tpu.memory_space<vmem>>, vector<2x1x8xf32>
    tpu.vector_store %arg4[%c0_13, %c0_14, %c0_15], %22 {strides = array<i32>} : memref<2x1x8xf32, #tpu.memory_space<vmem>>, vector<2x1x8xf32>,
    return
  }
  func.func @transform_0(%arg0: i32, %arg1: i32) -> (i32, i32, i32) {
    %c0_i32 = arith.constant 0 : i32
    %c0_i32_0 = arith.constant 0 : i32
    %c0_i32_1 = arith.constant 0 : i32
    return %arg0, %c0_i32, %c0_i32_0 : i32, i32, i32
  }
  func.func @transform_1(%arg0: i32, %arg1: i32) -> (i32, i32, i32) {
    %c0_i32 = arith.constant 0 : i32
    %c0_i32_0 = arith.constant 0 : i32
    return %arg0, %c0_i32, %arg1 : i32, i32, i32
  }
  func.func @transform_2(%arg0: i32, %arg1: i32) -> (i32, i32, i32) {
    %c0_i32 = arith.constant 0 : i32
    %c0_i32_0 = arith.constant 0 : i32
    %c0_i32_1 = arith.constant 0 : i32
    return %arg0, %c0_i32, %c0_i32_0 : i32, i32, i32
  }
}

</mosaic_0001>

<llo_original>
// kernel: tpu_custom_call.1
$region0: #{tpu_custom_call.1}
  #allocation0 [shape = 'u32[]', space=smem, size = 0x4, offset = 0x4, fixed_abs, tag = 'smem constant byte address 0x4 - core index']
  #allocation1 [shape = 'u32[144,128]{1,0:T(1,128)}', space=vmem, size = 0x12000, scoped, tag = 'internal scratch']
  %s0 = inlined_call_operand.vmem [shape: bf16[4,8,32], index: 0, kind: input, shape index: {}]
  %s1 = inlined_call_operand.vmem [shape: bf16[4,32,8], index: 1, kind: input, shape index: {}]
  %s2 = inlined_call_operand.hbm [shape: f32[4,1,8], index: 2, kind: output, shape index: {}]
  %s3 = sld [smem:[#allocation0]]
  $region45: #{tpu_custom_call.1} parent=0
    _
  %s5 = ssub.s32 1, %s3
  %s6 = scalar_select 0, %s5, %s3
  $region1: #{tpu_custom_call.1} parent=0
    #allocation2 [shape = 'u8[2048]{0}', space=vmem, size = 0x800, scoped, tag = 'output window, operand 0']
    #allocation3 [shape = 's32[2]{0}', space=sflag, size = 0x8, scoped, tag = 'scoped memory for tpu_custom_call.1']
    %7 = vsyncpa [#allocation3], 0
    %s8 = scalar_lea.sflag [#allocation3], 1
    %9 = vsyncpa %s8, 0
    loop: start=0, step=1, limit=4
    $region2: #{tpu_custom_call.1} parent=1 // loop_pre_header
      _
    $region3: #{tpu_custom_call.1} parent=1 // loop_header
      %s11 = sphi 0, %s15
      %p12 = scmp.ge.s32.totalorder %s11, 4
      %s18 = sphi 0, %s30
      %s19 = sphi 0, %s26
      %s20 = sphi 0, %s18
      %s21 = sphi 0, %s19
      %s22 = sphi 0, %s20
      %s23 = sphi 0, %s21
      %s33 = sphi 0, %s35
      %s36 = sphi 0, %s33
      %s37 = sphi 0, %s36
      %s53 = sphi 0, %s37
      %s61 = sphi 0, %s63
      %s64 = sphi 0, %s61
      %s65 = sphi 0, %s64
      %s81 = sphi 0, %s65
      %s87 = sphi 0, %s89
      %s90 = sphi 0, %s87
      %s91 = sphi 0, %s90
      %s107 = sphi 0, %s91
    $region4: #{tpu_custom_call.1} parent=1 // loop_header_branch
      %14 = sbr.rel (%p12) target = $region8
    $region5: #{tpu_custom_call.1} parent=1 // loop_body
      %s16 = ssub.s32 %s11, 1
      %s17 = ssub.s32 %s11, 2
      %s24 = sadd.s32 1, %s19
      %p25 = scmp.ge.s32.totalorder %s24, 1
      %s26 = scalar_select %p25, 0, %s24
      %s27 = sadd.s32 1, %s18
      %s28 = scalar_select %p25, %s27, %s18
      %p29 = scmp.ge.s32.totalorder %s28, 2
      %s30 = scalar_select %p29, 0, %s28
      %s31 = ssub.s32 %s18, %s30
      %p32 = scmp.eq.s32.totalorder %s31, 0
      %s34 = sadd.s32 %s33, 1
      %s35 = scalar_select %p32, %s33, %s34
      %p38 = pneg %p32
      %p39 = scmp.eq.s32.totalorder %s11, 1
      %p40 = por %p38, %p39
      %p41 = scmp.ne.s32.totalorder %s33, %s36
      %p42 = scmp.eq.s32.totalorder %s11, 0
      %p43 = por %p41, %p42
      %p44 = scmp.ne.s32.totalorder %s33, %s36
      %p45 = scmp.eq.s32.totalorder %s16, 1
      %p46 = por %p44, %p45
      %p47 = scmp.ne.s32.totalorder %s36, %s37
      %p48 = scmp.eq.s32.totalorder %s16, 0
      %p49 = por %p47, %p48
      %p50 = scmp.ne.s32.totalorder %s36, %s37
      %p51 = scmp.eq.s32.totalorder %s17, 1
      %p52 = por %p50, %p51
      %p54 = scmp.ne.s32.totalorder %s37, %s53
      %p55 = scmp.eq.s32.totalorder %s17, 0
      %p56 = por %p54, %p55
      %s57 = ssub.s32 %s18, %s30
      %s58 = ssub.s32 %s19, %s26
      %s59 = sor.u32 %s57, %s58
      %p60 = scmp.eq.s32.totalorder %s59, 0
      %s62 = sadd.s32 %s61, 1
      %s63 = scalar_select %p60, %s61, %s62
      %p66 = pneg %p60
      %p67 = scmp.eq.s32.totalorder %s11, 1
      %p68 = por %p66, %p67
      %p69 = scmp.ne.s32.totalorder %s61, %s64
      %p70 = scmp.eq.s32.totalorder %s11, 0
      %p71 = por %p69, %p70
      %p72 = scmp.ne.s32.totalorder %s61, %s64
      %p73 = scmp.eq.s32.totalorder %s16, 1
      %p74 = por %p72, %p73
      %p75 = scmp.ne.s32.totalorder %s64, %s65
      %p76 = scmp.eq.s32.totalorder %s16, 0
      %p77 = por %p75, %p76
      %p78 = scmp.ne.s32.totalorder %s64, %s65
      %p79 = scmp.eq.s32.totalorder %s17, 1
      %p80 = por %p78, %p79
      %p82 = scmp.ne.s32.totalorder %s65, %s81
      %p83 = scmp.eq.s32.totalorder %s17, 0
      %p84 = por %p82, %p83
      %s85 = ssub.s32 %s18, %s30
      %p86 = scmp.eq.s32.totalorder %s85, 0
      %s88 = sadd.s32 %s87, 1
      %s89 = scalar_select %p86, %s87, %s88
      %p92 = pneg %p86
      %p93 = scmp.eq.s32.totalorder %s11, 1
      %p94 = por %p92, %p93
      %p95 = scmp.ne.s32.totalorder %s87, %s90
      %p96 = scmp.eq.s32.totalorder %s11, 0
      %p97 = por %p95, %p96
      %p98 = scmp.ne.s32.totalorder %s87, %s90
      %p99 = scmp.eq.s32.totalorder %s16, 1
      %p100 = por %p98, %p99
      %p101 = scmp.ne.s32.totalorder %s90, %s91
      %p102 = scmp.eq.s32.totalorder %s16, 0
      %p103 = por %p101, %p102
      %p104 = scmp.ne.s32.totalorder %s90, %s91
      %p105 = scmp.eq.s32.totalorder %s17, 1
      %p106 = por %p104, %p105
      %p108 = scmp.ne.s32.totalorder %s91, %s107
      %p109 = scmp.eq.s32.totalorder %s17, 0
      %p110 = por %p108, %p109
      %p111 = scmp.le.s32.totalorder 1, %s11
      %p112 = scmp.lt.s32.totalorder %s11, 3
      %p113 = pnand %p111, %p112
      %p114 = pneg %p113
      // Predicated region
      $region9: #{tpu_custom_call.1} parent=5 // pred_check
        _
      $region10: #{tpu_custom_call.1} parent=5 // pred_check_branch
        %116 = sbr.rel (%p113) target = $region12
      $region11: #{tpu_custom_call.1} parent=5 // pred_region
        %s117 = ssub.s32 %s11, 1
      $region12: #{tpu_custom_call.1} parent=5 // pred_fallthru
        _
      %p118 = scmp.lt.s32.totalorder %s11, 2
      // Predicated region
      $region13: #{tpu_custom_call.1} parent=5 // pred_check
        %p119 = pneg %p118
      $region14: #{tpu_custom_call.1} parent=5 // pred_check_branch
        %121 = sbr.rel (%p119) target = $region16
      $region15: #{tpu_custom_call.1} parent=5 // pred_region
        // Predicated region
        $region17: #{tpu_custom_call.1} parent=15 // pred_check
          %p122 = pneg %p43
        $region18: #{tpu_custom_call.1} parent=15 // pred_check_branch
          %124 = sbr.rel (%p122) target = $region20
        $region19: #{tpu_custom_call.1} parent=15 // pred_region
          %s125 = smul.u32 2, %s18
          %p126 = scmp.lt.s32.totalorder %s125, 3
          %s127 = scalar_select %p126, %s125, 3
          %s128 = smul.addr %s127, 4
          %s129 = scalar_lea.vmem %s0, %s128
          %s130 = smul.u32 2, %s18
        $region20: #{tpu_custom_call.1} parent=15 // pred_fallthru
          _
        // Predicated region
        $region21: #{tpu_custom_call.1} parent=15 // pred_check
          %p131 = pneg %p71
        $region22: #{tpu_custom_call.1} parent=15 // pred_check_branch
          %133 = sbr.rel (%p131) target = $region24
        $region23: #{tpu_custom_call.1} parent=15 // pred_region
          %s134 = smul.u32 2, %s18
          %p135 = scmp.lt.s32.totalorder %s134, 3
          %s136 = scalar_select %p135, %s134, 3
          %p137 = scmp.lt.s32.totalorder %s19, 0
          %s138 = scalar_select %p137, %s19, 0
          %s139 = smul.addr %s136, 4
          %s140 = sadd.s32 %s138, %s139
          %s141 = smul.addr %s140, 4
          %s142 = scalar_lea.vmem %s1, %s141
          %s143 = smul.u32 2, %s18
        $region24: #{tpu_custom_call.1} parent=15 // pred_fallthru
          _
      $region16: #{tpu_custom_call.1} parent=5 // pred_fallthru
        _
      %p144 = scmp.le.s32.totalorder 1, %s11
      %p145 = scmp.lt.s32.totalorder %s11, 3
      %p146 = pnand %p144, %p145
      %p147 = pneg %p146
      // Predicated region
      $region25: #{tpu_custom_call.1} parent=5 // pred_check
        _
      $region26: #{tpu_custom_call.1} parent=5 // pred_check_branch
        %149 = sbr.rel (%p146) target = $region28
      $region27: #{tpu_custom_call.1} parent=5 // pred_region
        %s150 = ssub.s32 %s11, 1
        %s151 = smul.u32 2, %s20
        %p152 = scmp.lt.s32.totalorder %s151, 3
        %s153 = scalar_select %p152, %s151, 3
        %s154 = smul.addr %s153, 4
        %s155 = scalar_lea.vmem %s0, %s154
        %p156 = pneg %p49
        %p157 = pneg %p46
        %s158 = smul.u32 2, %s20
        %p159 = scmp.lt.s32.totalorder %s158, 3
        %s160 = scalar_select %p159, %s158, 3
        %p161 = scmp.lt.s32.totalorder %s21, 0
        %s162 = scalar_select %p161, %s21, 0
        %s163 = smul.addr %s160, 4
        %s164 = sadd.s32 %s162, %s163
        %s165 = smul.addr %s164, 4
        %s166 = scalar_lea.vmem %s1, %s165
        %p167 = pneg %p77
        %p168 = pneg %p74
        %p169 = pneg %p103
        %p170 = pneg %p100
        %s171 = sand.u32 %s90, 1
        %s172 = scalar_lea.sflag [#allocation3], %s171
        %s173 = sand.u32 %s90, 1
        %s174 = smul.addr %s173, 2
        %s175 = scalar_lea.vmem [#allocation2], %s174
        %s176 = smul.u32 2, %s20
        %p177 = scmp.lt.s32.totalorder %s176, 3
        %s178 = scalar_select %p177, %s176, 3
        %s179 = smul.addr %s178, 4
        %s180 = scalar_lea.vmem %s0, %s179
        %s181 = smul.u32 2, %s20
        %s182 = smul.u32 2, %s20
        %p183 = scmp.lt.s32.totalorder %s182, 3
        %s184 = scalar_select %p183, %s182, 3
        %p185 = scmp.lt.s32.totalorder %s21, 0
        %s186 = scalar_select %p185, %s21, 0
        %s187 = smul.addr %s184, 4
        %s188 = sadd.s32 %s186, %s187
        %s189 = smul.addr %s188, 4
        %s190 = scalar_lea.vmem %s1, %s189
        %s191 = smul.u32 2, %s20
        %s192 = smul.u32 2, %s20
        %p194 = scmp.eq.s32.totalorder %s21, 0
        // Predicated region
        $region29: #{tpu_custom_call.1} parent=27 // pred_check
          %p195 = pneg %p194
        $region30: #{tpu_custom_call.1} parent=27 // pred_check_branch
          %197 = sbr.rel (%p195) target = $region32
        $region31: #{tpu_custom_call.1} parent=27 // pred_region
          %vm198 = vcmask 57344
          %199 = vst.msk [vmem:[%s175] sm:$0x1] %vm198, 0.0
          %200 = vst.msk [vmem:[%s175 + $0x1] sm:$0x1] %vm198, 0.0
        $region32: #{tpu_custom_call.1} parent=27 // pred_fallthru
          _
        %v201 = vld [vmem:[%s180] sm:$0xf]
        %v202 = vld [vmem:[%s180 + $0x4] sm:$0xf]
        %v203 = vld [vmem:[%s190] sm:$0xf]
        %v204 = vld [vmem:[%s190 + $0x4] sm:$0xf]
        %v205 = vld [vmem:[%s190 + $0x8] sm:$0xf]
        %v206 = vld [vmem:[%s190 + $0xc] sm:$0xf]
        %v207 = vld [vmem:[%s190 + $0x10] sm:$0xf]
        %v208 = vld [vmem:[%s190 + $0x14] sm:$0xf]
        %v209 = vld [vmem:[%s190 + $0x18] sm:$0xf]
        %v210 = vld [vmem:[%s190 + $0x1c] sm:$0xf]
        %v215 = vunpack.c.l.b16 %v203
        %v216 = vunpack.c.l.b16 %v204
        %v217 = vunpack.c.l.b16 %v205
        %v218 = vunpack.c.l.b16 %v206
        %v219 = vpack.c.b16 %v216, %v215
        %v220 = vpack.c.b16 %v218, %v217
        %vm223 = vcmask 261120
        %v225 = vsel %vm223, %v201, 0
        %227 = vmatprep.subr.bf16.mxu0 0
        %228 = vmatpush1.bf16.msra.mxu0 0
        %229 = vmatprep.subr.bf16.mxu0 0
        %230 = vmatpush1.bf16.msra.mxu0 0
        %231 = vmatprep.subr.bf16.mxu0 0
        %232 = vmatpush1.bf16.msra.mxu0 0
        %233 = vmatprep.subr.bf16.mxu0 0
        %234 = vmatpush1.bf16.msra.mxu0 0
        %235 = vmatprep.subr.bf16.mxu0 0
        %236 = vmatpush1.bf16.msra.mxu0 0
        %237 = vmatprep.subr.bf16.mxu0 0
        %238 = vmatpush1.bf16.msra.mxu0 0
        %239 = vmatprep.subr.bf16.mxu0 0
        %240 = vmatpush1.bf16.msra.mxu0 %v220
        %241 = vmatprep.subr.bf16.mxu0 0
        %242 = vmatpush1.bf16.msra.mxu0 %v219
        %243 = vmatprep.subr.bf16.mxu0 0
        %244 = vmatpush2.bf16.msra.mxu0 0
        %245 = vmatprep.subr.bf16.mxu0 0
        %246 = vmatpush2.bf16.msra.mxu0 0
        %247 = vmatprep.subr.bf16.mxu0 0
        %248 = vmatpush2.bf16.msra.mxu0 0
        %249 = vmatprep.subr.bf16.mxu0 0
        %250 = vmatpush2.bf16.msra.mxu0 0
        %251 = vmatprep.subr.bf16.mxu0 0
        %252 = vmatpush2.bf16.msra.mxu0 0
        %253 = vmatprep.subr.bf16.mxu0 0
        %254 = vmatpush2.bf16.msra.mxu0 0
        %255 = vmatprep.subr.bf16.mxu0 0
        %256 = vmatpush2.bf16.msra.mxu0 0
        %257 = vmatprep.subr.bf16.mxu0 0
        %258 = vmatpush2.bf16.msra.mxu0 0
        %259 = vmatprep.mubr.bf16.mxu0 0
        %260 = vmatmul.mubr.bf16.gmra.mxu0 %v225
        %v261 = vpop.f32.mrf.mxu0
        %v262 = vadd.f32 0.0, %v261
        %v263 = vpop.f32.mrf.mxu0
        %v264 = vpop.f32.mrf.mxu0
        %v265 = vpop.f32.mrf.mxu0
        %266 = vdwg.mxu0
        %v271 = vunpack.c.l.b16 %v207
        %v272 = vunpack.c.l.b16 %v208
        %v273 = vunpack.c.l.b16 %v209
        %v274 = vunpack.c.l.b16 %v210
        %v275 = vpack.c.b16 %v272, %v271
        %v276 = vpack.c.b16 %v274, %v273
        %v280 = vsel %vm223, %v202, 0
        %282 = vmatprep.subr.bf16.mxu0 0
        %283 = vmatpush1.bf16.msra.mxu0 0
        %284 = vmatprep.subr.bf16.mxu0 0
        %285 = vmatpush1.bf16.msra.mxu0 0
        %286 = vmatprep.subr.bf16.mxu0 0
        %287 = vmatpush1.bf16.msra.mxu0 0
        %288 = vmatprep.subr.bf16.mxu0 0
        %289 = vmatpush1.bf16.msra.mxu0 0
        %290 = vmatprep.subr.bf16.mxu0 0
        %291 = vmatpush1.bf16.msra.mxu0 0
        %292 = vmatprep.subr.bf16.mxu0 0
        %293 = vmatpush1.bf16.msra.mxu0 0
        %294 = vmatprep.subr.bf16.mxu0 0
        %295 = vmatpush1.bf16.msra.mxu0 %v276
        %296 = vmatprep.subr.bf16.mxu0 0
        %297 = vmatpush1.bf16.msra.mxu0 %v275
        %298 = vmatprep.subr.bf16.mxu0 0
        %299 = vmatpush2.bf16.msra.mxu0 0
        %300 = vmatprep.subr.bf16.mxu0 0
        %301 = vmatpush2.bf16.msra.mxu0 0
        %302 = vmatprep.subr.bf16.mxu0 0
        %303 = vmatpush2.bf16.msra.mxu0 0
        %304 = vmatprep.subr.bf16.mxu0 0
        %305 = vmatpush2.bf16.msra.mxu0 0
        %306 = vmatprep.subr.bf16.mxu0 0
        %307 = vmatpush2.bf16.msra.mxu0 0
        %308 = vmatprep.subr.bf16.mxu0 0
        %309 = vmatpush2.bf16.msra.mxu0 0
        %310 = vmatprep.subr.bf16.mxu0 0
        %311 = vmatpush2.bf16.msra.mxu0 0
        %312 = vmatprep.subr.bf16.mxu0 0
        %313 = vmatpush2.bf16.msra.mxu0 0
        %314 = vmatprep.mubr.bf16.mxu0 0
        %315 = vmatmul.mubr.bf16.gmra.mxu0 %v280
        %v316 = vpop.f32.mrf.mxu0
        %v317 = vadd.f32 0.0, %v316
        %v318 = vpop.f32.mrf.mxu0
        %v319 = vpop.f32.mrf.mxu0
        %v320 = vpop.f32.mrf.mxu0
        %321 = vdwg.mxu0
        %v322 = vsub.f32 %v262, 1.0
        %v323 = vsub.f32 %v317, 1.0
        %v324 = vmul.f32 %v322, 10.0
        %v325 = vmul.f32 %v323, 10.0
        %v326 = vmul.f32 %v324, 1.442695
        %v327 = vpow.pop %v326
        %v328 = vmul.f32 %v325, 1.442695
        %v329 = vpow.pop %v328
        %v330 = vlaneseq
        %v331 = vshrl.u32 %v330, 7
        %v332 = vlaneseq
        %v333 = vand.u32 %v332, 127
        %s334 = smul.u32 %s21, 8
        %v335 = vstv %s334
        %v336 = vadd.s32 %v333, %v335
        %vm337 = vcmp.ne.s32.totalorder %v336, %v331
        %v338 = vsel %vm337, %v327, 0.0
        %v339 = vsel %vm337, %v329, 0.0
        %vm340 = vcmask 64512
        %v341 = vsel %vm340, %v338, 0.0
        %342 = vadd.xlane.f32.xlu0 %v341
        %v343 = vpop.xlane.xlu0 %342
        %v344 = vsel %vm340, %v339, 0.0
        %345 = vadd.xlane.f32.xlu0 %v344
        %v346 = vpop.xlane.xlu0 %345
        %v347 = vld [vmem:[%s175] sm:$0x1]
        %v348 = vld [vmem:[%s175 + $0x1] sm:$0x1]
        %v351 = vlaneseq
        %v352 = vshrl.u32 %v351, 7
        %v353 = vsub.s32 0, %v352
        %v354 = vrot.slane %v343, %v353
        %v355 = vlaneseq
        %v356 = vshrl.u32 %v355, 7
        %v357 = vsub.s32 1, %v356
        %v358 = vrot.slane %v343, %v357
        %v359 = vlaneseq
        %v360 = vshrl.u32 %v359, 7
        %v361 = vsub.s32 2, %v360
        %v362 = vrot.slane %v343, %v361
        %v363 = vlaneseq
        %v364 = vshrl.u32 %v363, 7
        %v365 = vsub.s32 3, %v364
        %v366 = vrot.slane %v343, %v365
        %v367 = vlaneseq
        %v368 = vshrl.u32 %v367, 7
        %v369 = vsub.s32 4, %v368
        %v370 = vrot.slane %v343, %v369
        %v371 = vlaneseq
        %v372 = vshrl.u32 %v371, 7
        %v373 = vsub.s32 5, %v372
        %v374 = vrot.slane %v343, %v373
        %v375 = vlaneseq
        %v376 = vshrl.u32 %v375, 7
        %v377 = vsub.s32 6, %v376
        %v378 = vrot.slane %v343, %v377
        %v379 = vlaneseq
        %v380 = vshrl.u32 %v379, 7
        %v381 = vsub.s32 7, %v380
        %v382 = vrot.slane %v343, %v381
        %v383 = vlaneseq
        %v384 = vshrl.u32 %v383, 7
        %v385 = vsub.s32 0, %v384
        %v386 = vrot.slane %v346, %v385
        %v387 = vlaneseq
        %v388 = vshrl.u32 %v387, 7
        %v389 = vsub.s32 1, %v388
        %v390 = vrot.slane %v346, %v389
        %v391 = vlaneseq
        %v392 = vshrl.u32 %v391, 7
        %v393 = vsub.s32 2, %v392
        %v394 = vrot.slane %v346, %v393
        %v395 = vlaneseq
        %v396 = vshrl.u32 %v395, 7
        %v397 = vsub.s32 3, %v396
        %v398 = vrot.slane %v346, %v397
        %v399 = vlaneseq
        %v400 = vshrl.u32 %v399, 7
        %v401 = vsub.s32 4, %v400
        %v402 = vrot.slane %v346, %v401
        %v403 = vlaneseq
        %v404 = vshrl.u32 %v403, 7
        %v405 = vsub.s32 5, %v404
        %v406 = vrot.slane %v346, %v405
        %v407 = vlaneseq
        %v408 = vshrl.u32 %v407, 7
        %v409 = vsub.s32 6, %v408
        %v410 = vrot.slane %v346, %v409
        %v411 = vlaneseq
        %v412 = vshrl.u32 %v411, 7
        %v413 = vsub.s32 7, %v412
        %v414 = vrot.slane %v346, %v413
        %v415 = vcombine.low %v354, %v358
        %v416 = vcombine.low %v362, %v366
        %v417 = vcombine.low %v370, %v374
        %v418 = vcombine.low %v378, %v382
        %v420 = vunpack.c.l.s4 1966171168
        %v421 = vunpack.c.0.s8 %v420
        %v422 = vlaneseq
        %v423 = vshrl.u32 %v422, 7
        %v424 = vsub.s32 %v421, %v423
        %v425 = vrot.slane %v415, %v424
        %v427 = vunpack.c.l.s4 1966171168
        %v428 = vunpack.c.0.s8 %v427
        %v429 = vlaneseq
        %v430 = vshrl.u32 %v429, 7
        %v431 = vsub.s32 %v428, %v430
        %v432 = vrot.slane %v416, %v431
        %v434 = vunpack.c.l.s4 1966171168
        %v435 = vunpack.c.0.s8 %v434
        %v436 = vlaneseq
        %v437 = vshrl.u32 %v436, 7
        %v438 = vsub.s32 %v435, %v437
        %v439 = vrot.slane %v417, %v438
        %v441 = vunpack.c.l.s4 1966171168
        %v442 = vunpack.c.0.s8 %v441
        %v443 = vlaneseq
        %v444 = vshrl.u32 %v443, 7
        %v445 = vsub.s32 %v442, %v444
        %v446 = vrot.slane %v418, %v445
        %v447 = vcombine.low %v425, %v432
        %v448 = vcombine.low %v439, %v446
        %v450 = vunpack.c.l.s4 1966171168
        %v451 = vunpack.c.0.s8 %v450
        %v452 = vlaneseq
        %v453 = vshrl.u32 %v452, 7
        %v454 = vsub.s32 %v451, %v453
        %v455 = vrot.slane %v447, %v454
        %v457 = vunpack.c.l.s4 1966171168
        %v458 = vunpack.c.0.s8 %v457
        %v459 = vlaneseq
        %v460 = vshrl.u32 %v459, 7
        %v461 = vsub.s32 %v458, %v460
        %v462 = vrot.slane %v448, %v461
        %v463 = vcombine.low %v455, %v462
        %v464 = vcombine.low %v386, %v390
        %v465 = vcombine.low %v394, %v398
        %v466 = vcombine.low %v402, %v406
        %v467 = vcombine.low %v410, %v414
        %v469 = vunpack.c.l.s4 1966171168
        %v470 = vunpack.c.0.s8 %v469
        %v471 = vlaneseq
        %v472 = vshrl.u32 %v471, 7
        %v473 = vsub.s32 %v470, %v472
        %v474 = vrot.slane %v464, %v473
        %v476 = vunpack.c.l.s4 1966171168
        %v477 = vunpack.c.0.s8 %v476
        %v478 = vlaneseq
        %v479 = vshrl.u32 %v478, 7
        %v480 = vsub.s32 %v477, %v479
        %v481 = vrot.slane %v465, %v480
        %v483 = vunpack.c.l.s4 1966171168
        %v484 = vunpack.c.0.s8 %v483
        %v485 = vlaneseq
        %v486 = vshrl.u32 %v485, 7
        %v487 = vsub.s32 %v484, %v486
        %v488 = vrot.slane %v466, %v487
        %v490 = vunpack.c.l.s4 1966171168
        %v491 = vunpack.c.0.s8 %v490
        %v492 = vlaneseq
        %v493 = vshrl.u32 %v492, 7
        %v494 = vsub.s32 %v491, %v493
        %v495 = vrot.slane %v467, %v494
        %v496 = vcombine.low %v474, %v481
        %v497 = vcombine.low %v488, %v495
        %v499 = vunpack.c.l.s4 1966171168
        %v500 = vunpack.c.0.s8 %v499
        %v501 = vlaneseq
        %v502 = vshrl.u32 %v501, 7
        %v503 = vsub.s32 %v500, %v502
        %v504 = vrot.slane %v496, %v503
        %v506 = vunpack.c.l.s4 1966171168
        %v507 = vunpack.c.0.s8 %v506
        %v508 = vlaneseq
        %v509 = vshrl.u32 %v508, 7
        %v510 = vsub.s32 %v507, %v509
        %v511 = vrot.slane %v497, %v510
        %v512 = vcombine.low %v504, %v511
        %513 = vset.pattern.permute.xlu0 0
        %514 = vperm.xlu0 %513, %v463
        %v515 = vpop.permute.xlu0 %514
        %516 = vset.pattern.permute.xlu0 0
        %517 = vperm.xlu0 %516, %v512
        %v518 = vpop.permute.xlu0 %517
        %v519 = vlaneseq
        %v520 = vshrl.u32 %v519, 7
        %v521 = vsub.s32 %v333, %v520
        %v522 = vrot.slane %v515, %v521
        %v523 = vlaneseq
        %v524 = vshrl.u32 %v523, 7
        %v525 = vsub.s32 %v333, %v524
        %v526 = vrot.slane %v518, %v525
        %v528 = vunpack.c.l.s4 1966171168
        %v529 = vunpack.c.0.s8 %v528
        %v530 = vlaneseq
        %v531 = vshrl.u32 %v530, 7
        %v532 = vsub.s32 %v529, %v531
        %v533 = vrot.slane %v522, %v532
        %v535 = vunpack.c.l.s4 1966171168
        %v536 = vunpack.c.0.s8 %v535
        %v537 = vlaneseq
        %v538 = vshrl.u32 %v537, 7
        %v539 = vsub.s32 %v536, %v538
        %v540 = vrot.slane %v533, %v539
        %v542 = vunpack.c.l.s4 1966171168
        %v543 = vunpack.c.0.s8 %v542
        %v544 = vlaneseq
        %v545 = vshrl.u32 %v544, 7
        %v546 = vsub.s32 %v543, %v545
        %v547 = vrot.slane %v526, %v546
        %v549 = vunpack.c.l.s4 1966171168
        %v550 = vunpack.c.0.s8 %v549
        %v551 = vlaneseq
        %v552 = vshrl.u32 %v551, 7
        %v553 = vsub.s32 %v550, %v552
        %v554 = vrot.slane %v547, %v553
        %v557 = vadd.f32 %v347, %v540
        %v558 = vadd.f32 %v348, %v554
        %vm559 = vcmask 57344
        %560 = vst.msk [vmem:[%s175] sm:$0x1] %vm559, %v557
        %561 = vst.msk [vmem:[%s175 + $0x1] sm:$0x1] %vm559, %v558
        %s562 = sand.u32 %s90, 1
        %s563 = scalar_lea.sflag [#allocation3], %s562
        %s564 = sand.u32 %s90, 1
        %s565 = smul.addr %s564, 2
        %s566 = scalar_lea.vmem [#allocation2], %s565
        // Predicated region
        $region33: #{tpu_custom_call.1} parent=27 // pred_check
          %p567 = pneg %p100
        $region34: #{tpu_custom_call.1} parent=27 // pred_check_branch
          %569 = sbr.rel (%p567) target = $region36
        $region35: #{tpu_custom_call.1} parent=27 // pred_region
          %s570 = smul.u32 2, %s20
          %s572 = ssub.s32 32, 32
          %573 = vsyncadd %s563, %s572
          %s574 = smul.addr %s570, 16
          %s575 = scalar_lea.hbm %s2, %s574
          %s576 = sshll.u32 %s566, 4
          %s577 = int_to_ptr.vmem [resolvable:$true] %s576
          %582 = dma.vmem_to_hbm [thread:$0]  %s577, 32, %s575, %s563, 16, 16, 1
        $region36: #{tpu_custom_call.1} parent=27 // pred_fallthru
          _
      $region28: #{tpu_custom_call.1} parent=5 // pred_fallthru
        _
      %p583 = scmp.le.s32.totalorder 2, %s11
      // Predicated region
      $region37: #{tpu_custom_call.1} parent=5 // pred_check
        %p584 = pneg %p583
      $region38: #{tpu_custom_call.1} parent=5 // pred_check_branch
        %586 = sbr.rel (%p584) target = $region40
      $region39: #{tpu_custom_call.1} parent=5 // pred_region
        %s587 = ssub.s32 %s11, 2
        // Predicated region
        $region41: #{tpu_custom_call.1} parent=39 // pred_check
          %p588 = pneg %p106
        $region42: #{tpu_custom_call.1} parent=39 // pred_check_branch
          %590 = sbr.rel (%p588) target = $region44
        $region43: #{tpu_custom_call.1} parent=39 // pred_region
          %s591 = sand.u32 %s91, 1
          %s592 = scalar_lea.sflag [#allocation3], %s591
          %s593 = sand.u32 %s91, 1
          %s594 = smul.addr %s593, 2
          %s595 = scalar_lea.vmem [#allocation2], %s594
          %596 = dma.done %s592, 32
        $region44: #{tpu_custom_call.1} parent=39 // pred_fallthru
          _
      $region40: #{tpu_custom_call.1} parent=5 // pred_fallthru
        _
    $region6: #{tpu_custom_call.1} parent=1 // loop_footer
      %s15 = sadd.s32 1, %s11
    $region7: #{tpu_custom_call.1} parent=1 // loop_footer_branch
      %10 = sbr.rel target = $region3
    $region8: #{tpu_custom_call.1} parent=1 // loop_exit
      _
    %597 = vsyncpa [#allocation3], 1
    %s598 = scalar_lea.sflag [#allocation3], 1
    %599 = vsyncpa %s598, 1

</llo_original>
